<compile_context>
chip_gen: v7x
topology: tpu7x:2x2x1
jax: 0.10.0
libtpu: 0.0.40
codegen_flags: <defaults>
</compile_context>

<pallas_src>
import functools

import numpy as np
import jax
import jax.numpy as jnp
from jax import lax
from jax.experimental import pallas as pl
from jax.experimental.pallas import tpu as pltpu


def _round_up(n, m):
    return ((n + m - 1) // m) * m


def _largest_divisor_leq(n, cap):
    cap = int(max(1, min(n, cap)))
    for d in range(cap, 0, -1):
        if n % d == 0:
            return d
    return 1


# ----------------------------------------------------------------------------
# Kernel 1: CharCNN conv1d(k=3, pad=1) + max-pool over word length + bias
#   im2col -> ONE (Tn*W, KCp) @ (KCp, Cout) matmul per tile, max over positions
# ----------------------------------------------------------------------------
def charcnn_kernel(cols_ref, w_ref, b_ref, out_ref):
    # cols_ref: (Tn, Wp, KCp) im2col'd char embeddings (KCp lane-padded to 128)
    # w_ref:    (KCp, Cout), b_ref: (1, Cout), out_ref: (Tn, Cout)
    tn, wp, kcp = cols_ref.shape
    flat = cols_ref[...].reshape(tn * wp, kcp)           # 8-aligned sublane merge
    conv = jnp.dot(flat, w_ref[...], preferred_element_type=jnp.float32)
    conv = conv.reshape(tn, wp, w_ref.shape[1])
    # bias is constant over positions -> add once after the max (identical math)
    out_ref[...] = jnp.max(conv, axis=1) + b_ref[...]


def char_cnn_forward(char_embeds, conv_w, conv_b, use_bf16=False):
    # char_embeds: (N, W, Cin) f32 (already gathered); conv_w: (K, Cin, Cout)
    N, W, Cin = char_embeds.shape
    K, _, Cout = conv_w.shape
    pad = K // 2
    mm_dtype = jnp.bfloat16 if use_bf16 else jnp.float32

    xpad = jnp.pad(char_embeds, ((0, 0), (pad, pad), (0, 0)))
    # im2col: row (n, t) holds [xpad[n,t,:], ..., xpad[n,t+K-1,:]]
    cols = jnp.concatenate([xpad[:, k:k + W, :] for k in range(K)], axis=-1)

    KC = K * Cin
    KCp = _round_up(KC, 128)                   # lane-dense contraction
    if KCp != KC:
        cols = jnp.pad(cols, ((0, 0), (0, 0), (0, KCp - KC)))
    Wp = _round_up(W, 8)                       # sublane-aligned word axis
    if Wp != W:
        # replicate position 0 so the max over positions is unaffected
        cols = jnp.concatenate(
            [cols, jnp.broadcast_to(cols[:, :1, :], (N, Wp - W, KCp))], axis=1)

    w2 = conv_w.reshape(KC, Cout)
    if KCp != KC:
        w2 = jnp.pad(w2, ((0, KCp - KC), (0, 0)))

    tn = min(512, _round_up(N, 16))
    n_pad = _round_up(N, tn)
    if n_pad != N:
        cols = jnp.pad(cols, ((0, n_pad - N), (0, 0), (0, 0)))

    out = pl.pallas_call(
        charcnn_kernel,
        out_shape=jax.ShapeDtypeStruct((n_pad, Cout), jnp.float32),
        grid=(n_pad // tn,),
        in_specs=[pl.BlockSpec((tn, Wp, KCp), lambda i: (i, 0, 0)),
                  pl.BlockSpec((KCp, Cout), lambda i: (0, 0)),
                  pl.BlockSpec((1, Cout), lambda i: (0, 0))],
        out_specs=pl.BlockSpec((tn, Cout), lambda i: (i, 0)),
        compiler_params=pltpu.CompilerParams(
            dimension_semantics=("parallel",),
            vmem_limit_bytes=32 * 1024 * 1024),
    )(cols.astype(mm_dtype), w2.astype(mm_dtype), conv_b)
    return out[:N] if n_pad != N else out


# ----------------------------------------------------------------------------
# Kernel 2: hoisted LSTM input projection (both directions, bias folded,
#   word/char halves accumulated -> no concat materialisation), split outputs
# ----------------------------------------------------------------------------
def input_proj_kernel(xw_ref, xc_ref, ww_ref, wc_ref, b_ref, of_ref, ob_ref):
    # xw_ref: (Tr, E), xc_ref: (Tr, Cc), ww/wc: (E|Cc, 8*Hp), b_ref: (1, 8*Hp)
    acc = jnp.dot(xw_ref[...], ww_ref[...], preferred_element_type=jnp.float32)
    acc = acc + jnp.dot(xc_ref[...], wc_ref[...],
                        preferred_element_type=jnp.float32)
    acc = acc + b_ref[...]
    g4 = of_ref.shape[-1]
    of_ref[...] = acc[:, :g4].astype(of_ref.dtype)       # fwd gates  [i f g o]
    ob_ref[...] = acc[:, g4:].astype(ob_ref.dtype)       # bwd gates  [i f g o]


def input_proj_forward(xw, xc, wih_word, wih_char, b_cat, use_bf16=False):
    R, E = xw.shape
    Cc = xc.shape[1]
    G8 = wih_word.shape[1]
    G4 = G8 // 2
    mm_dtype = jnp.bfloat16 if use_bf16 else jnp.float32
    out_dtype = jnp.bfloat16 if use_bf16 else jnp.float32
    item = 2 if use_bf16 else 4

    # row tile sized against VMEM (double-buffered in/out + f32 accumulator)
    bytes_per_row = 2 * (E + Cc) * item + G8 * 4 + 2 * G8 * item
    tr = min(512, max(16, ((8 * 1024 * 1024) // bytes_per_row) // 16 * 16))
    tr = min(tr, _round_up(R, 16))
    r_pad = _round_up(R, tr)
    if r_pad != R:
        xw = jnp.pad(xw, ((0, r_pad - R), (0, 0)))
        xc = jnp.pad(xc, ((0, r_pad - R), (0, 0)))

    gxf, gxb = pl.pallas_call(
        input_proj_kernel,
        out_shape=(jax.ShapeDtypeStruct((r_pad, G4), out_dtype),
                   jax.ShapeDtypeStruct((r_pad, G4), out_dtype)),
        grid=(r_pad // tr,),
        in_specs=[pl.BlockSpec((tr, E), lambda i: (i, 0)),
                  pl.BlockSpec((tr, Cc), lambda i: (i, 0)),
                  pl.BlockSpec((E, G8), lambda i: (0, 0)),
                  pl.BlockSpec((Cc, G8), lambda i: (0, 0)),
                  pl.BlockSpec((1, G8), lambda i: (0, 0))],
        out_specs=(pl.BlockSpec((tr, G4), lambda i: (i, 0)),
                   pl.BlockSpec((tr, G4), lambda i: (i, 0))),
        compiler_params=pltpu.CompilerParams(
            dimension_semantics=("parallel",),
            vmem_limit_bytes=32 * 1024 * 1024),
    )(xw.astype(mm_dtype), xc.astype(mm_dtype),
      wih_word.astype(mm_dtype), wih_char.astype(mm_dtype), b_cat)
    if r_pad != R:
        gxf, gxb = gxf[:R], gxb[:R]
    return gxf, gxb


# ----------------------------------------------------------------------------
# Kernel 3: bidirectional LSTM recurrence
#   grid = (batch-tiles "parallel", S-chunks "arbitrary"); h/c carried in
#   scratch; bwd direction fed by reversed BlockSpec index_map; one fused
#   block-diagonal recurrent matmul per step (optional unfused path for v5e).
# ----------------------------------------------------------------------------
def bilstm_recurrence_kernel(lens_ref, gxf_ref, gxb_ref, whh_ref,
                             out_f_ref, out_b_ref, h_sc, cf_sc, cb_sc,
                             *, fuse_hh):
    # lens_ref: (TB, 1) int32
    # gxf_ref:  (Ts, TB, 4*Hp)  chunk k            (x-proj + bias, fwd gates)
    # gxb_ref:  (Ts, TB, 4*Hp)  chunk nc-1-k       (x-proj + bias, bwd gates)
    # whh_ref:  (2*Hp, 8*Hp)    blockdiag(Whh_f, Whh_b)
    # out_*:    (Ts, TB, Hp);   h_sc: (TB, 2*Hp) = [h_fwd | h_bwd]; c*: (TB, Hp)
    Ts, TB, G4 = gxf_ref.shape
    Hp = G4 // 4
    k = pl.program_id(1)
    nc = pl.num_programs(1)
    mm_dtype = whh_ref.dtype

    @pl.when(k == 0)
    def _init():                               # new batch tile -> zero carries
        h_sc[...] = jnp.zeros_like(h_sc)
        cf_sc[...] = jnp.zeros_like(cf_sc)
        cb_sc[...] = jnp.zeros_like(cb_sc)

    lens = lens_ref[...]                       # loaded once per chunk
    t0_f = k * Ts                              # absolute time offset, fwd chunk
    t0_b = (nc - 1 - k) * Ts                   # absolute time offset, bwd chunk

    def cell(gates, c):
        # lane-aligned gate slices, PyTorch order [i, f, g, o], each Hp wide
        i = jax.nn.sigmoid(gates[:, 0:Hp])
        f = jax.nn.sigmoid(gates[:, Hp:2 * Hp])
        g = jnp.tanh(gates[:, 2 * Hp:3 * Hp])
        o = jax.nn.sigmoid(gates[:, 3 * Hp:4 * Hp])
        c_new = f * c + i * g
        h_new = o * jnp.tanh(c_new)
        return h_new, c_new

    def body(t, carry):
        tb = Ts - 1 - t                        # bwd local timestep
        h_cat = h_sc[...]
        if fuse_hh:
            # one 256-deep matmul fills the v6e/v7x MXU; halves MXU pushes/pops
            hh = jnp.dot(h_cat.astype(mm_dtype), whh_ref[...],
                         preferred_element_type=jnp.float32)     # (TB, 8*Hp)
            hh_f, hh_b = hh[:, :G4], hh[:, G4:]
        else:
            # two independent 128-deep matmuls (v5e's MXU is already full)
            hh_f = jnp.dot(h_cat[:, :Hp].astype(mm_dtype), whh_ref[:Hp, :G4],
                           preferred_element_type=jnp.float32)
            hh_b = jnp.dot(h_cat[:, Hp:].astype(mm_dtype), whh_ref[Hp:, G4:],
                           preferred_element_type=jnp.float32)

        gates_f = gxf_ref[t].astype(jnp.float32) + hh_f
        gates_b = gxb_ref[tb].astype(jnp.float32) + hh_b

        hfn, cfn = cell(gates_f, cf_sc[...])
        hbn, cbn = cell(gates_b, cb_sc[...])

        m_f = (lens > (t0_f + t)).astype(jnp.float32)    # pack_padded mask
        m_b = (lens > (t0_b + tb)).astype(jnp.float32)
        hfn = m_f * hfn
        cfn = m_f * cfn
        hbn = m_b * hbn                        # stays 0 until t == len-1
        cbn = m_b * cbn

        cf_sc[...] = cfn
        cb_sc[...] = cbn
        h_sc[:, 0:Hp] = hfn
        h_sc[:, Hp:2 * Hp] = hbn
        out_f_ref[t] = hfn                     # lane-dense 128-wide stores
        out_b_ref[tb] = hbn
        return carry

    lax.fori_loop(0, Ts, body, 0, unroll=min(8, Ts))


def bilstm_recurrence(gxf, gxb, seq_lengths, whh_cat, Hp,
                      use_bf16=False, fuse_hh=True, ts_cap=None):
    S, B, G4 = gxf.shape
    mm_dtype = jnp.bfloat16 if use_bf16 else jnp.float32

    # batch tiling: >=2 tiles lets v7x megacore shard the "parallel" axis
    if B % 16 == 0:
        nb, TB = 2, B // 2
    else:
        nb, TB = 1, B

    # S chunking: keep the streamed working set well under scoped VMEM
    gx_item = 2 if use_bf16 else 4
    bytes_per_ts = TB * (2 * G4 * gx_item + 2 * Hp * 4)
    ts_budget = max(1, (12 * 1024 * 1024) // bytes_per_ts)
    if ts_cap is not None:
        ts_budget = min(ts_budget, ts_cap)
    Ts = _largest_divisor_leq(S, ts_budget)
    nc = S // Ts

    lens = seq_lengths.reshape(B, 1).astype(jnp.int32)
    kernel = functools.partial(bilstm_recurrence_kernel, fuse_hh=fuse_hh)

    out_f, out_b = pl.pallas_call(
        kernel,
        out_shape=(jax.ShapeDtypeStruct((S, B, Hp), jnp.float32),
                   jax.ShapeDtypeStruct((S, B, Hp), jnp.float32)),
        grid=(nb, nc),
        in_specs=[
            pl.BlockSpec((TB, 1), lambda b, k: (b, 0)),
            pl.BlockSpec((Ts, TB, G4), lambda b, k: (k, b, 0)),
            pl.BlockSpec((Ts, TB, G4), lambda b, k: (nc - 1 - k, b, 0)),
            pl.BlockSpec((2 * Hp, 2 * G4), lambda b, k: (0, 0)),
        ],
        out_specs=(
            pl.BlockSpec((Ts, TB, Hp), lambda b, k: (k, b, 0)),
            pl.BlockSpec((Ts, TB, Hp), lambda b, k: (nc - 1 - k, b, 0)),
        ),
        scratch_shapes=[pltpu.VMEM((TB, 2 * Hp), jnp.float32),
                        pltpu.VMEM((TB, Hp), jnp.float32),
                        pltpu.VMEM((TB, Hp), jnp.float32)],
        compiler_params=pltpu.CompilerParams(
            dimension_semantics=("parallel", "arbitrary"),
            vmem_limit_bytes=48 * 1024 * 1024),
    )(lens, gxf, gxb, whh_cat.astype(mm_dtype))
    return out_f, out_b


# ----------------------------------------------------------------------------
# Weight preparation (lane-aligned gates; word/char split; block-diag Whh)
# ----------------------------------------------------------------------------
def _pad_gate_cols(w, H, Hp):
    # (R, 4*H) -> (R, 4*Hp), PyTorch gate order [i, f, g, o], zero padding
    R = w.shape[0]
    w4 = w.reshape(R, 4, H)
    w4 = jnp.pad(w4, ((0, 0), (0, 0), (0, Hp - H)))
    return w4.reshape(R, 4 * Hp)


def _prepare_lstm_weights(params, Hp, E):
    H = params['whh_f'].shape[0]
    wih_f = _pad_gate_cols(params['wih_f'], H, Hp)        # (D, 4*Hp)
    wih_b = _pad_gate_cols(params['wih_b'], H, Hp)
    wih_word = jnp.concatenate([wih_f[:E], wih_b[:E]], axis=-1)   # (E, 8*Hp)
    wih_char = jnp.concatenate([wih_f[E:], wih_b[E:]], axis=-1)   # (Cc, 8*Hp)
    b_cat = jnp.concatenate([_pad_gate_cols(params['b_f'], H, Hp),
                             _pad_gate_cols(params['b_b'], H, Hp)], axis=-1)
    whh_f = jnp.pad(_pad_gate_cols(params['whh_f'], H, Hp), ((0, Hp - H), (0, 0)))
    whh_b = jnp.pad(_pad_gate_cols(params['whh_b'], H, Hp), ((0, Hp - H), (0, 0)))
    z = jnp.zeros((Hp, 4 * Hp), jnp.float32)
    whh_cat = jnp.concatenate(
        [jnp.concatenate([whh_f, z], axis=-1),
         jnp.concatenate([z, whh_b], axis=-1)], axis=0)           # (2*Hp, 8*Hp)
    return wih_word, wih_char, b_cat, whh_cat


# ----------------------------------------------------------------------------
# Full BiLSTMEncoder forward
# ----------------------------------------------------------------------------
def bilstm_encoder_forward(params, x, seq_lengths, char_x, use_bf16=False,
                           fuse_hh=True, ts_cap=None):
    B, S = x.shape
    W = char_x.shape[2]
    E = params['word_emb'].shape[1]
    H = params['whh_f'].shape[0]
    Hp = _round_up(H, 128)                     # lane-aligned per-gate width

    # Gathers produce TIME-MAJOR layouts directly (no activation transpose pass)
    word_emb = jnp.take(params['word_emb'], x.T, axis=0)             # (S, B, E)
    char_ids = jnp.transpose(char_x, (1, 0, 2)).reshape(S * B, W)    # tiny ints
    char_emb = jnp.take(params['char_emb'], char_ids, axis=0)        # (S*B,W,Ce)
    char_feat = char_cnn_forward(char_emb, params['conv_w'], params['conv_b'],
                                 use_bf16=use_bf16)                  # (S*B, Cc)

    wih_word, wih_char, b_cat, whh_cat = _prepare_lstm_weights(params, Hp, E)

    # hoisted input projection (both directions, bias folded, no emb concat)
    gxf2d, gxb2d = input_proj_forward(word_emb.reshape(S * B, E), char_feat,
                                      wih_word, wih_char, b_cat,
                                      use_bf16=use_bf16)
    G4 = 4 * Hp
    gxf = gxf2d.reshape(S, B, G4)              # free row-major reshape
    gxb = gxb2d.reshape(S, B, G4)

    out_f, out_b = bilstm_recurrence(gxf, gxb, seq_lengths, whh_cat, Hp,
                                     use_bf16=use_bf16, fuse_hh=fuse_hh,
                                     ts_cap=ts_cap)
    out = jnp.concatenate([out_f[..., :H], out_b[..., :H]], axis=-1)  # (S,B,2H)
    return jnp.transpose(out, (1, 0, 2))                              # (B,S,2H)


# ----------------------------------------------------------------------------
# Deterministic parameter init (shapes follow the PyTorch module __init__)
# ----------------------------------------------------------------------------
def init_params(key, vocab_size, E, hidden_dim, num_chars, Ce, Cc, K=3):
    H = hidden_dim // 2
    D = E + Cc
    keys = jax.random.split(key, 12)

    def u(k, shape, scale):
        return jax.random.uniform(k, shape, jnp.float32, -scale, scale)

    word_emb = jax.random.normal(keys[0], (vocab_size, E), jnp.float32) * 0.1
    word_emb = word_emb.at[0].set(0.0)          # padding_idx=0
    char_emb = jax.random.normal(keys[1], (num_chars, Ce), jnp.float32) * 0.1
    char_emb = char_emb.at[0].set(0.0)          # padding_idx=0

    conv_scale = 1.0 / np.sqrt(Ce * K)
    lstm_scale = 1.0 / np.sqrt(H)
    return dict(
        word_emb=word_emb,
        char_emb=char_emb,
        conv_w=u(keys[2], (K, Ce, Cc), conv_scale),
        conv_b=u(keys[3], (1, Cc), conv_scale),
        wih_f=u(keys[4], (D, 4 * H), lstm_scale),
        whh_f=u(keys[5], (H, 4 * H), lstm_scale),
        b_f=u(keys[6], (1, 4 * H), lstm_scale) + u(keys[7], (1, 4 * H), lstm_scale),
        wih_b=u(keys[8], (D, 4 * H), lstm_scale),
        whh_b=u(keys[9], (H, 4 * H), lstm_scale),
        b_b=u(keys[10], (1, 4 * H), lstm_scale) + u(keys[11], (1, 4 * H), lstm_scale),
    )


# ----------------------------------------------------------------------------
# Pure-JAX reference (same math, lax.scan) for correctness checks
# ----------------------------------------------------------------------------
def reference_forward(params, x, seq_lengths, char_x):
    B, S = x.shape
    _, _, W = char_x.shape
    K, Ce, Cc = params['conv_w'].shape
    H = params['whh_f'].shape[0]

    word_emb = params['word_emb'][x]
    char_emb = params['char_emb'][char_x.reshape(B * S, W)]
    xpad = jnp.pad(char_emb, ((0, 0), (K // 2, K // 2), (0, 0)))
    conv = jnp.zeros((B * S, W, Cc), jnp.float32)
    for k in range(K):
        conv = conv + jnp.einsum('nwc,co->nwo', xpad[:, k:k + W], params['conv_w'][k])
    conv = conv + params['conv_b']
    char_feat = conv.max(axis=1).reshape(B, S, Cc)
    emb = jnp.concatenate([word_emb, char_feat], axis=-1)

    x_tm = jnp.transpose(emb, (1, 0, 2))
    mask = (jnp.arange(S)[:, None] < seq_lengths[None, :]
            ).astype(jnp.float32)[..., None]

    def run_dir(wih, whh, b, reverse):
        xs = x_tm[::-1] if reverse else x_tm
        ms = mask[::-1] if reverse else mask

        def step(carry, inp):
            h, c = carry
            x_t, m = inp
            gates = x_t @ wih + h @ whh + b
            i = jax.nn.sigmoid(gates[:, :H])
            f = jax.nn.sigmoid(gates[:, H:2 * H])
            g = jnp.tanh(gates[:, 2 * H:3 * H])
            o = jax.nn.sigmoid(gates[:, 3 * H:])
            c_r = f * c + i * g
            h_r = o * jnp.tanh(c_r)
            return (m * h_r, m * c_r), m * h_r

        init = (jnp.zeros((B, H), jnp.float32), jnp.zeros((B, H), jnp.float32))
        _, outs = lax.scan(step, init, (xs, ms))
        return outs[::-1] if reverse else outs

    out_f = run_dir(params['wih_f'], params['whh_f'], params['b_f'], False)
    out_b = run_dir(params['wih_b'], params['whh_b'], params['b_b'], True)
    return jnp.transpose(jnp.concatenate([out_f, out_b], axis=-1), (1, 0, 2))


if __name__ == "__main__":
    vocab_size, E = 50, 32
    hidden_dim = 32                 # per-direction H = 16
    num_chars, Ce, Cc = 30, 16, 32

    kp, kx1, kc1, kx2, kc2 = jax.random.split(jax.random.PRNGKey(0), 5)
    params = init_params(kp, vocab_size, E, hidden_dim, num_chars, Ce, Cc)

    # --- config 1: tiny (single S chunk, single B tile), f32, fused Whh path
    B1, S1, W1 = 2, 8, 8
    x1 = jax.random.randint(kx1, (B1, S1), 1, vocab_size, dtype=jnp.int32)
    cx1 = jax.random.randint(kc1, (B1, S1, W1), 1, num_chars, dtype=jnp.int32)
    len1 = jnp.array([S1, 5], dtype=jnp.int32)
    ref1 = reference_forward(params, x1, len1, cx1)

    out1 = jax.block_until_ready(bilstm_encoder_forward(params, x1, len1, cx1))
    assert out1.shape == (B1, S1, hidden_dim)
    np.testing.assert_allclose(np.asarray(out1), np.asarray(ref1),
                               rtol=1e-4, atol=1e-4)

    # unfused recurrent-matmul path (preferred on v5e's 128-deep MXU)
    out1_nf = jax.block_until_ready(
        bilstm_encoder_forward(params, x1, len1, cx1, fuse_hh=False))
    np.testing.assert_allclose(np.asarray(out1_nf), np.asarray(ref1),
                               rtol=1e-4, atol=1e-4)

    # --- config 2: exercises S-chunked recurrence (nc=3) with reversed bwd
    #     blocks, 2-way batch tiling ("parallel" axis), CharCNN word padding
    B2, S2, W2 = 16, 12, 6
    x2 = jax.random.randint(kx2, (B2, S2), 1, vocab_size, dtype=jnp.int32)
    cx2 = jax.random.randint(kc2, (B2, S2, W2), 1, num_chars, dtype=jnp.int32)
    len2 = jnp.array([12, 11, 10, 9, 8, 7, 6, 5, 4, 3, 2, 1, 12, 6, 9, 3],
                     dtype=jnp.int32)
    ref2 = reference_forward(params, x2, len2, cx2)

    out2 = jax.block_until_ready(
        bilstm_encoder_forward(params, x2, len2, cx2, ts_cap=4))
    assert out2.shape == (B2, S2, hidden_dim)
    np.testing.assert_allclose(np.asarray(out2), np.asarray(ref2),
                               rtol=1e-4, atol=1e-4)

    # bf16 MXU-input path (gx stored bf16; accumulation/elementwise stay f32)
    out2_bf = jax.block_until_ready(
        bilstm_encoder_forward(params, x2, len2, cx2, use_bf16=True, ts_cap=4))
    np.testing.assert_allclose(np.asarray(out2_bf), np.asarray(ref2),
                               rtol=1e-1, atol=5e-2)

    print("KERNEL_OK")
</pallas_src>

<mosaic_0001>
module attributes {stable_mosaic.version = 11 : i64} {
  func.func @charcnn_kernel(%arg0: i32, %arg1: memref<16x8x128xf32, #tpu.memory_space<vmem>>, %arg2: memref<128x32xf32, #tpu.memory_space<vmem>>, %arg3: memref<1x32xf32, #tpu.memory_space<vmem>>, %arg4: memref<16x32xf32, #tpu.memory_space<vmem>>) attributes {dimension_semantics = [#tpu.dimension_semantics<parallel>], iteration_bounds = array<i64: 1>, scalar_prefetch = 0 : i64, scratch_operands = 0 : i64, tpu.core_type = #tpu.core_type<tc>, window_params = [{transform_indices = @transform_0, window_bounds = array<i64: 16, 8, 128>}, {pipeline_mode = #tpu.pipeline_mode<synchronous>, transform_indices = @transform_1, window_bounds = array<i64: 128, 32>}, {pipeline_mode = #tpu.pipeline_mode<synchronous>, transform_indices = @transform_2, window_bounds = array<i64: 1, 32>}, {transform_indices = @transform_3, window_bounds = array<i64: 16, 32>}]} {
    %c0 = arith.constant 0 : index
    %c0_0 = arith.constant 0 : index
    %c0_1 = arith.constant 0 : index
    %0 = vector.load %arg1[%c0, %c0_0, %c0_1] : memref<16x8x128xf32, #tpu.memory_space<vmem>>, vector<16x8x128xf32>
    %1 = vector.shape_cast %0 : vector<16x8x128xf32> to vector<128x128xf32>
    %c0_2 = arith.constant 0 : index
    %c0_3 = arith.constant 0 : index
    %2 = vector.load %arg2[%c0_2, %c0_3] : memref<128x32xf32, #tpu.memory_space<vmem>>, vector<128x32xf32>
    %cst = arith.constant dense<0.000000e+00> : vector<128x32xf32>
    %3 = tpu.matmul %1, %2, %cst {dimension_numbers = #tpu.dot_dimension_numbers<[1], [0], [0], [1], [0, 0, 1, 1], [], []>} : vector<128x128xf32>, vector<128x32xf32>, vector<128x32xf32> -> vector<128x32xf32>
    %4 = vector.shape_cast %3 : vector<128x32xf32> to vector<16x8x32xf32>
    %cst_4 = arith.constant dense<0xFF800000> : vector<16x32xf32>
    %5 = vector.multi_reduction <maximumf>, %4, %cst_4 [1] : vector<16x8x32xf32> to vector<16x32xf32>
    %c0_5 = arith.constant 0 : index
    %c0_6 = arith.constant 0 : index
    %6 = vector.load %arg3[%c0_5, %c0_6] : memref<1x32xf32, #tpu.memory_space<vmem>>, vector<1x32xf32>
    %7 = vector.broadcast %6 : vector<1x32xf32> to vector<16x32xf32>
    %8 = arith.addf %5, %7 : vector<16x32xf32>
    %c0_7 = arith.constant 0 : index
    %c0_8 = arith.constant 0 : index
    %9 = vector.load %arg4[%c0_7, %c0_8] : memref<16x32xf32, #tpu.memory_space<vmem>>, vector<16x32xf32>
    tpu.vector_store %arg4[%c0_7, %c0_8], %8 {strides = array<i32>} : memref<16x32xf32, #tpu.memory_space<vmem>>, vector<16x32xf32>,
    return
  }
  func.func @transform_0(%arg0: i32) -> (i32, i32, i32) {
    %c0_i32 = arith.constant 0 : i32
    %c0_i32_0 = arith.constant 0 : i32
    %c0_i32_1 = arith.constant 0 : i32
    return %arg0, %c0_i32, %c0_i32_0 : i32, i32, i32
  }
  func.func @transform_1(%arg0: i32) -> (i32, i32) {
    %c0_i32 = arith.constant 0 : i32
    %c0_i32_0 = arith.constant 0 : i32
    %c0_i32_1 = arith.constant 0 : i32
    return %c0_i32, %c0_i32_0 : i32, i32
  }
  func.func @transform_2(%arg0: i32) -> (i32, i32) {
    %c0_i32 = arith.constant 0 : i32
    %c0_i32_0 = arith.constant 0 : i32
    %c0_i32_1 = arith.constant 0 : i32
    return %c0_i32, %c0_i32_0 : i32, i32
  }
  func.func @transform_3(%arg0: i32) -> (i32, i32) {
    %c0_i32 = arith.constant 0 : i32
    %c0_i32_0 = arith.constant 0 : i32
    return %arg0, %c0_i32 : i32, i32
  }
}

</mosaic_0001>

<llo_original>
// kernel: tpu_custom_call.1
$region0: #{tpu_custom_call.1}
  #allocation0 [shape = 'u32[]', space=smem, size = 0x4, offset = 0x4, fixed_abs, tag = 'smem constant byte address 0x4 - core index']
  #allocation1 [shape = 'u32[144,128]{1,0:T(1,128)}', space=vmem, size = 0x12000, scoped, tag = 'internal scratch']
  %s0 = inlined_call_operand.vmem [shape: f32[16,8,128], index: 0, kind: input, shape index: {}]
  %s1 = inlined_call_operand.vmem [shape: f32[128,32], index: 1, kind: input, shape index: {}]
  %s2 = inlined_call_operand.vmem [shape: f32[1,32], index: 2, kind: input, shape index: {}]
  %s3 = inlined_call_operand.hbm [shape: f32[16,32], index: 3, kind: output, shape index: {}]
  %s4 = sld [smem:[#allocation0]]
  $region22: #{tpu_custom_call.1} parent=0
    _
  %s6 = ssub.s32 1, %s4
  %s7 = scalar_select 0, %s6, %s4
  $region1: #{tpu_custom_call.1} parent=0
    #allocation2 [shape = 'u8[8192]{0}', space=vmem, size = 0x2000, scoped, tag = 'output window, operand 0, single buffered']
    #allocation3 [shape = 's32[1]{0}', space=sflag, size = 0x4, scoped, tag = 'scoped memory for tpu_custom_call.1']
    %8 = vsyncpa [#allocation3], 0
    // Predicated region
    $region2: #{tpu_custom_call.1} parent=1 // pred_check
      _
    $region3: #{tpu_custom_call.1} parent=1 // pred_check_branch
      %10 = sbr.rel (0) target = $region5
    $region4: #{tpu_custom_call.1} parent=1 // pred_region
      _
    $region5: #{tpu_custom_call.1} parent=1 // pred_fallthru
      _
    // Predicated region
    $region6: #{tpu_custom_call.1} parent=1 // pred_check
      _
    $region7: #{tpu_custom_call.1} parent=1 // pred_check_branch
      %12 = sbr.rel (0) target = $region9
    $region8: #{tpu_custom_call.1} parent=1 // pred_region
      _
    $region9: #{tpu_custom_call.1} parent=1 // pred_fallthru
      _
    // Predicated region
    $region10: #{tpu_custom_call.1} parent=1 // pred_check
      _
    $region11: #{tpu_custom_call.1} parent=1 // pred_check_branch
      %14 = sbr.rel (0) target = $region13
    $region12: #{tpu_custom_call.1} parent=1 // pred_region
      _
    $region13: #{tpu_custom_call.1} parent=1 // pred_fallthru
      _
    %v15 = vld [vmem:[%s0] sm:$0xff]
    %v16 = vld [vmem:[%s0 + $0x8] sm:$0xff]
    %v17 = vld [vmem:[%s0 + $0x10] sm:$0xff]
    %v18 = vld [vmem:[%s0 + $0x18] sm:$0xff]
    %v19 = vld [vmem:[%s0 + $0x20] sm:$0xff]
    %v20 = vld [vmem:[%s0 + $0x28] sm:$0xff]
    %v21 = vld [vmem:[%s0 + $0x30] sm:$0xff]
    %v22 = vld [vmem:[%s0 + $0x38] sm:$0xff]
    %v23 = vld [vmem:[%s0 + $0x40] sm:$0xff]
    %v24 = vld [vmem:[%s0 + $0x48] sm:$0xff]
    %v25 = vld [vmem:[%s0 + $0x50] sm:$0xff]
    %v26 = vld [vmem:[%s0 + $0x58] sm:$0xff]
    %v27 = vld [vmem:[%s0 + $0x60] sm:$0xff]
    %v28 = vld [vmem:[%s0 + $0x68] sm:$0xff]
    %v29 = vld [vmem:[%s0 + $0x70] sm:$0xff]
    %v30 = vld [vmem:[%s0 + $0x78] sm:$0xff]
    %v31 = vld [vmem:[%s1] sm:$0xff]
    %v32 = vld [vmem:[%s1 + $0x8] sm:$0xff]
    %v33 = vld [vmem:[%s1 + $0x10] sm:$0xff]
    %v34 = vld [vmem:[%s1 + $0x18] sm:$0xff]
    %v35 = vld [vmem:[%s1 + $0x20] sm:$0xff]
    %v36 = vld [vmem:[%s1 + $0x28] sm:$0xff]
    %v37 = vld [vmem:[%s1 + $0x30] sm:$0xff]
    %v38 = vld [vmem:[%s1 + $0x38] sm:$0xff]
    %v39 = vld [vmem:[%s1 + $0x40] sm:$0xff]
    %v40 = vld [vmem:[%s1 + $0x48] sm:$0xff]
    %v41 = vld [vmem:[%s1 + $0x50] sm:$0xff]
    %v42 = vld [vmem:[%s1 + $0x58] sm:$0xff]
    %v43 = vld [vmem:[%s1 + $0x60] sm:$0xff]
    %v44 = vld [vmem:[%s1 + $0x68] sm:$0xff]
    %v45 = vld [vmem:[%s1 + $0x70] sm:$0xff]
    %v46 = vld [vmem:[%s1 + $0x78] sm:$0xff]
    %47 = vmatprep.subr.mxu0 0.0
    %48 = vmatpush1.msra.mxu0 %v31
    %49 = vmatprep.subr.mxu0 0.0
    %50 = vmatpush1.msra.mxu0 %v32
    %51 = vmatprep.subr.mxu0 0.0
    %52 = vmatpush1.msra.mxu0 %v33
    %53 = vmatprep.subr.mxu0 0.0
    %54 = vmatpush1.msra.mxu0 %v34
    %55 = vmatprep.subr.mxu0 0.0
    %56 = vmatpush1.msra.mxu0 %v35
    %57 = vmatprep.subr.mxu0 0.0
    %58 = vmatpush1.msra.mxu0 %v36
    %59 = vmatprep.subr.mxu0 0.0
    %60 = vmatpush1.msra.mxu0 %v37
    %61 = vmatprep.subr.mxu0 0.0
    %62 = vmatpush1.msra.mxu0 %v38
    %63 = vmatprep.subr.mxu0 0.0
    %64 = vmatpush1.msra.mxu0 %v39
    %65 = vmatprep.subr.mxu0 0.0
    %66 = vmatpush1.msra.mxu0 %v40
    %67 = vmatprep.subr.mxu0 0.0
    %68 = vmatpush1.msra.mxu0 %v41
    %69 = vmatprep.subr.mxu0 0.0
    %70 = vmatpush1.msra.mxu0 %v42
    %71 = vmatprep.subr.mxu0 0.0
    %72 = vmatpush1.msra.mxu0 %v43
    %73 = vmatprep.subr.mxu0 0.0
    %74 = vmatpush1.msra.mxu0 %v44
    %75 = vmatprep.subr.mxu0 0.0
    %76 = vmatpush1.msra.mxu0 %v45
    %77 = vmatprep.subr.mxu0 0.0
    %78 = vmatpush1.msra.mxu0 %v46
    %79 = vmatprep.subr.mxu0 0.0
    %80 = vmatpush1.msra.mxu0 0.0
    %81 = vmatprep.subr.mxu0 0.0
    %82 = vmatpush1.msra.mxu0 0.0
    %83 = vmatprep.subr.mxu0 0.0
    %84 = vmatpush1.msra.mxu0 0.0
    %85 = vmatprep.subr.mxu0 0.0
    %86 = vmatpush1.msra.mxu0 0.0
    %87 = vmatprep.subr.mxu0 0.0
    %88 = vmatpush1.msra.mxu0 0.0
    %89 = vmatprep.subr.mxu0 0.0
    %90 = vmatpush1.msra.mxu0 0.0
    %91 = vmatprep.subr.mxu0 0.0
    %92 = vmatpush1.msra.mxu0 0.0
    %93 = vmatprep.subr.mxu0 0.0
    %94 = vmatpush1.msra.mxu0 0.0
    %95 = vmatprep.subr.mxu0 0.0
    %96 = vmatpush1.msra.mxu0 0.0
    %97 = vmatprep.subr.mxu0 0.0
    %98 = vmatpush1.msra.mxu0 0.0
    %99 = vmatprep.subr.mxu0 0.0
    %100 = vmatpush1.msra.mxu0 0.0
    %101 = vmatprep.subr.mxu0 0.0
    %102 = vmatpush1.msra.mxu0 0.0
    %103 = vmatprep.subr.mxu0 0.0
    %104 = vmatpush1.msra.mxu0 0.0
    %105 = vmatprep.subr.mxu0 0.0
    %106 = vmatpush1.msra.mxu0 0.0
    %107 = vmatprep.subr.mxu0 0.0
    %108 = vmatpush1.msra.mxu0 0.0
    %109 = vmatprep.subr.mxu0 0.0
    %110 = vmatpush1.msra.mxu0 0.0
    %111 = vmatprep.mubr.f32.mxu0 0.0
    %112 = vmatmul.mubr.f32.gmra.mrb[0].mxu0 %v15
    %v113 = vpop.f32.mrb[0].mxu0
    %v114 = vadd.f32 0.0, %v113
    %v115 = vpop.f32.mrb[0].mxu0
    %116 = vmatprep.mubr.f32.mxu0 0.0
    %117 = vmatmul.mubr.f32.gmra.mrb[0].mxu0 %v16
    %v118 = vpop.f32.mrb[0].mxu0
    %v119 = vadd.f32 0.0, %v118
    %v120 = vpop.f32.mrb[0].mxu0
    %121 = vmatprep.mubr.f32.mxu0 0.0
    %122 = vmatmul.mubr.f32.gmra.mrb[0].mxu0 %v17
    %v123 = vpop.f32.mrb[0].mxu0
    %v124 = vadd.f32 0.0, %v123
    %v125 = vpop.f32.mrb[0].mxu0
    %126 = vmatprep.mubr.f32.mxu0 0.0
    %127 = vmatmul.mubr.f32.gmra.mrb[0].mxu0 %v18
    %v128 = vpop.f32.mrb[0].mxu0
    %v129 = vadd.f32 0.0, %v128
    %v130 = vpop.f32.mrb[0].mxu0
    %131 = vmatprep.mubr.f32.mxu0 0.0
    %132 = vmatmul.mubr.f32.gmra.mrb[0].mxu0 %v19
    %v133 = vpop.f32.mrb[0].mxu0
    %v134 = vadd.f32 0.0, %v133
    %v135 = vpop.f32.mrb[0].mxu0
    %136 = vmatprep.mubr.f32.mxu0 0.0
    %137 = vmatmul.mubr.f32.gmra.mrb[0].mxu0 %v20
    %v138 = vpop.f32.mrb[0].mxu0
    %v139 = vadd.f32 0.0, %v138
    %v140 = vpop.f32.mrb[0].mxu0
    %141 = vmatprep.mubr.f32.mxu0 0.0
    %142 = vmatmul.mubr.f32.gmra.mrb[0].mxu0 %v21
    %v143 = vpop.f32.mrb[0].mxu0
    %v144 = vadd.f32 0.0, %v143
    %v145 = vpop.f32.mrb[0].mxu0
    %146 = vmatprep.mubr.f32.mxu0 0.0
    %147 = vmatmul.mubr.f32.gmra.mrb[0].mxu0 %v22
    %v148 = vpop.f32.mrb[0].mxu0
    %v149 = vadd.f32 0.0, %v148
    %v150 = vpop.f32.mrb[0].mxu0
    %151 = vmatprep.mubr.f32.mxu0 0.0
    %152 = vmatmul.mubr.f32.gmra.mrb[0].mxu0 %v23
    %v153 = vpop.f32.mrb[0].mxu0
    %v154 = vadd.f32 0.0, %v153
    %v155 = vpop.f32.mrb[0].mxu0
    %156 = vmatprep.mubr.f32.mxu0 0.0
    %157 = vmatmul.mubr.f32.gmra.mrb[0].mxu0 %v24
    %v158 = vpop.f32.mrb[0].mxu0
    %v159 = vadd.f32 0.0, %v158
    %v160 = vpop.f32.mrb[0].mxu0
    %161 = vmatprep.mubr.f32.mxu0 0.0
    %162 = vmatmul.mubr.f32.gmra.mrb[0].mxu0 %v25
    %v163 = vpop.f32.mrb[0].mxu0
    %v164 = vadd.f32 0.0, %v163
    %v165 = vpop.f32.mrb[0].mxu0
    %166 = vmatprep.mubr.f32.mxu0 0.0
    %167 = vmatmul.mubr.f32.gmra.mrb[0].mxu0 %v26
    %v168 = vpop.f32.mrb[0].mxu0
    %v169 = vadd.f32 0.0, %v168
    %v170 = vpop.f32.mrb[0].mxu0
    %171 = vmatprep.mubr.f32.mxu0 0.0
    %172 = vmatmul.mubr.f32.gmra.mrb[0].mxu0 %v27
    %v173 = vpop.f32.mrb[0].mxu0
    %v174 = vadd.f32 0.0, %v173
    %v175 = vpop.f32.mrb[0].mxu0
    %176 = vmatprep.mubr.f32.mxu0 0.0
    %177 = vmatmul.mubr.f32.gmra.mrb[0].mxu0 %v28
    %v178 = vpop.f32.mrb[0].mxu0
    %v179 = vadd.f32 0.0, %v178
    %v180 = vpop.f32.mrb[0].mxu0
    %181 = vmatprep.mubr.f32.mxu0 0.0
    %182 = vmatmul.mubr.f32.gmra.mrb[0].mxu0 %v29
    %v183 = vpop.f32.mrb[0].mxu0
    %v184 = vadd.f32 0.0, %v183
    %v185 = vpop.f32.mrb[0].mxu0
    %186 = vmatprep.mubr.f32.mxu0 0.0
    %187 = vmatmul.mubr.f32.gmra.mrb[0].mxu0 %v30
    %v188 = vpop.f32.mrb[0].mxu0
    %v189 = vadd.f32 0.0, %v188
    %v190 = vpop.f32.mrb[0].mxu0
    %191 = vdwg.mxu0
    %vm192 = vcmask 261120
    %v193 = vsel %vm192, %v114, -inf
    %v194 = vrot.slane %v193, 4
    %v195 = vmax.f32 %v193, %v194
    %v196 = vrot.slane %v195, 2
    %v197 = vmax.f32 %v195, %v196
    %v198 = vrot.slane %v197, 1
    %v199 = vmax.f32 %v197, %v198
    %v200 = vsel %vm192, %v119, -inf
    %v201 = vrot.slane %v200, 4
    %v202 = vmax.f32 %v200, %v201
    %v203 = vrot.slane %v202, 2
    %v204 = vmax.f32 %v202, %v203
    %v205 = vrot.slane %v204, 1
    %v206 = vmax.f32 %v204, %v205
    %v207 = vsel %vm192, %v124, -inf
    %v208 = vrot.slane %v207, 4
    %v209 = vmax.f32 %v207, %v208
    %v210 = vrot.slane %v209, 2
    %v211 = vmax.f32 %v209, %v210
    %v212 = vrot.slane %v211, 1
    %v213 = vmax.f32 %v211, %v212
    %v214 = vsel %vm192, %v129, -inf
    %v215 = vrot.slane %v214, 4
    %v216 = vmax.f32 %v214, %v215
    %v217 = vrot.slane %v216, 2
    %v218 = vmax.f32 %v216, %v217
    %v219 = vrot.slane %v218, 1
    %v220 = vmax.f32 %v218, %v219
    %v221 = vsel %vm192, %v134, -inf
    %v222 = vrot.slane %v221, 4
    %v223 = vmax.f32 %v221, %v222
    %v224 = vrot.slane %v223, 2
    %v225 = vmax.f32 %v223, %v224
    %v226 = vrot.slane %v225, 1
    %v227 = vmax.f32 %v225, %v226
    %v228 = vsel %vm192, %v139, -inf
    %v229 = vrot.slane %v228, 4
    %v230 = vmax.f32 %v228, %v229
    %v231 = vrot.slane %v230, 2
    %v232 = vmax.f32 %v230, %v231
    %v233 = vrot.slane %v232, 1
    %v234 = vmax.f32 %v232, %v233
    %v235 = vsel %vm192, %v144, -inf
    %v236 = vrot.slane %v235, 4
    %v237 = vmax.f32 %v235, %v236
    %v238 = vrot.slane %v237, 2
    %v239 = vmax.f32 %v237, %v238
    %v240 = vrot.slane %v239, 1
    %v241 = vmax.f32 %v239, %v240
    %v242 = vsel %vm192, %v149, -inf
    %v243 = vrot.slane %v242, 4
    %v244 = vmax.f32 %v242, %v243
    %v245 = vrot.slane %v244, 2
    %v246 = vmax.f32 %v244, %v245
    %v247 = vrot.slane %v246, 1
    %v248 = vmax.f32 %v246, %v247
    %v249 = vsel %vm192, %v154, -inf
    %v250 = vrot.slane %v249, 4
    %v251 = vmax.f32 %v249, %v250
    %v252 = vrot.slane %v251, 2
    %v253 = vmax.f32 %v251, %v252
    %v254 = vrot.slane %v253, 1
    %v255 = vmax.f32 %v253, %v254
    %v256 = vsel %vm192, %v159, -inf
    %v257 = vrot.slane %v256, 4
    %v258 = vmax.f32 %v256, %v257
    %v259 = vrot.slane %v258, 2
    %v260 = vmax.f32 %v258, %v259
    %v261 = vrot.slane %v260, 1
    %v262 = vmax.f32 %v260, %v261
    %v263 = vsel %vm192, %v164, -inf
    %v264 = vrot.slane %v263, 4
    %v265 = vmax.f32 %v263, %v264
    %v266 = vrot.slane %v265, 2
    %v267 = vmax.f32 %v265, %v266
    %v268 = vrot.slane %v267, 1
    %v269 = vmax.f32 %v267, %v268
    %v270 = vsel %vm192, %v169, -inf
    %v271 = vrot.slane %v270, 4
    %v272 = vmax.f32 %v270, %v271
    %v273 = vrot.slane %v272, 2
    %v274 = vmax.f32 %v272, %v273
    %v275 = vrot.slane %v274, 1
    %v276 = vmax.f32 %v274, %v275
    %v277 = vsel %vm192, %v174, -inf
    %v278 = vrot.slane %v277, 4
    %v279 = vmax.f32 %v277, %v278
    %v280 = vrot.slane %v279, 2
    %v281 = vmax.f32 %v279, %v280
    %v282 = vrot.slane %v281, 1
    %v283 = vmax.f32 %v281, %v282
    %v284 = vsel %vm192, %v179, -inf
    %v285 = vrot.slane %v284, 4
    %v286 = vmax.f32 %v284, %v285
    %v287 = vrot.slane %v286, 2
    %v288 = vmax.f32 %v286, %v287
    %v289 = vrot.slane %v288, 1
    %v290 = vmax.f32 %v288, %v289
    %v291 = vsel %vm192, %v184, -inf
    %v292 = vrot.slane %v291, 4
    %v293 = vmax.f32 %v291, %v292
    %v294 = vrot.slane %v293, 2
    %v295 = vmax.f32 %v293, %v294
    %v296 = vrot.slane %v295, 1
    %v297 = vmax.f32 %v295, %v296
    %v298 = vsel %vm192, %v189, -inf
    %v299 = vrot.slane %v298, 4
    %v300 = vmax.f32 %v298, %v299
    %v301 = vrot.slane %v300, 2
    %v302 = vmax.f32 %v300, %v301
    %v303 = vrot.slane %v302, 1
    %v304 = vmax.f32 %v302, %v303
    %v305 = vld [vmem:[%s2] sm:$0x1]
    %v307 = vlaneseq
    %v308 = vshrl.u32 %v307, 7
    %v309 = vsub.s32 0, %v308
    %v310 = vrot.slane %v305, %v309
    %v312 = vadd.f32 %v199, %v310
    %v313 = vadd.f32 %v206, %v310
    %v314 = vadd.f32 %v213, %v310
    %v315 = vadd.f32 %v220, %v310
    %v316 = vadd.f32 %v227, %v310
    %v317 = vadd.f32 %v234, %v310
    %v318 = vadd.f32 %v241, %v310
    %v319 = vadd.f32 %v248, %v310
    %v320 = vadd.f32 %v255, %v310
    %v321 = vadd.f32 %v262, %v310
    %v322 = vadd.f32 %v269, %v310
    %v323 = vadd.f32 %v276, %v310
    %v324 = vadd.f32 %v283, %v310
    %v325 = vadd.f32 %v290, %v310
    %v326 = vadd.f32 %v297, %v310
    %v327 = vadd.f32 %v304, %v310
    %v344 = vrot.slane %v313, 7
    %vm345 = vcmask 1041409
    %v346 = vsel %vm345, %v344, %v312
    %v347 = vrot.slane %v314, 6
    %vm348 = vcmask 1042434
    %v349 = vsel %vm348, %v347, %v346
    %v350 = vrot.slane %v315, 5
    %vm351 = vcmask 1043459
    %v352 = vsel %vm351, %v350, %v349
    %v353 = vrot.slane %v316, 4
    %vm354 = vcmask 1044484
    %v355 = vsel %vm354, %v353, %v352
    %v356 = vrot.slane %v317, 3
    %vm357 = vcmask 1045509
    %v358 = vsel %vm357, %v356, %v355
    %v359 = vrot.slane %v318, 2
    %vm360 = vcmask 1046534
    %v361 = vsel %vm360, %v359, %v358
    %v362 = vrot.slane %v319, 1
    %vm363 = vcmask 1047559
    %v364 = vsel %vm363, %v362, %v361
    %v365 = vrot.slane %v321, 7
    %v366 = vsel %vm345, %v365, %v320
    %v367 = vrot.slane %v322, 6
    %v368 = vsel %vm348, %v367, %v366
    %v369 = vrot.slane %v323, 5
    %v370 = vsel %vm351, %v369, %v368
    %v371 = vrot.slane %v324, 4
    %v372 = vsel %vm354, %v371, %v370
    %v373 = vrot.slane %v325, 3
    %v374 = vsel %vm357, %v373, %v372
    %v375 = vrot.slane %v326, 2
    %v376 = vsel %vm360, %v375, %v374
    %v377 = vrot.slane %v327, 1
    %v378 = vsel %vm363, %v377, %v376
    %381 = vst.msk [vmem:[#allocation2] sm:$0xff] %vm192, %v364
    %382 = vst.msk [vmem:[#allocation2 + $0x8] sm:$0xff] %vm192, %v378
    // Predicated region
    $region14: #{tpu_custom_call.1} parent=1 // pred_check
      _
    $region15: #{tpu_custom_call.1} parent=1 // pred_check_branch
      %384 = sbr.rel (0) target = $region17
    $region16: #{tpu_custom_call.1} parent=1 // pred_region
      %s386 = ssub.s32 256, 256
      %387 = vsyncadd [#allocation3], %s386
      %s388 = sshll.u32 [#allocation2], 4
      %s389 = int_to_ptr.vmem [resolvable:$true] %s388
      %394 = dma.vmem_to_hbm [thread:$0]  %s389, 256, %s3, [#allocation3], 128, 128, 8
    $region17: #{tpu_custom_call.1} parent=1 // pred_fallthru
      _
    // Predicated region
    $region18: #{tpu_custom_call.1} parent=1 // pred_check
      _
    $region19: #{tpu_custom_call.1} parent=1 // pred_check_branch
      %396 = sbr.rel (0) target = $region21
    $region20: #{tpu_custom_call.1} parent=1 // pred_region
      %397 = dma.done [#allocation3], 256
    $region21: #{tpu_custom_call.1} parent=1 // pred_fallthru
      _
    %398 = vsyncpa [#allocation3], 1

</llo_original>
